<compile_context>
chip_gen: v6e
topology: v6e:2x2x1
jax: 0.10.0
libtpu: 0.0.40
codegen_flags: <defaults>
</compile_context>

<pallas_src>
import jax
import jax.numpy as jnp
from jax.experimental import pallas as pl
from jax.experimental.pallas import tpu as pltpu

BN_EPS = 1e-5


def _make_kernel(tk, x_resident):
    """Build the kernel for one (Out-tile j, K-tile k) grid step.

    x_ref:   (B, In) if x_resident else (B, TK)   activation (input dtype)
    v_ref:   (TN, TK)  raw weight_norm direction tile (input dtype)
    p_ref:   (3, TN)   packed per-feature params: [g, gamma, beta] (f32)
    o_ref:   (B, TN)   output tile
    acc_ref: (B, TN)   f32 accumulator scratch (resident across K)
    vsq_ref: (1, TN)   f32 accumulated sum(v^2) per output feature (resident across K)
    """

    def kernel(x_ref, v_ref, p_ref, o_ref, acc_ref, vsq_ref):
        k = pl.program_id(1)

        @pl.when(k == 0)
        def _init():
            acc_ref[...] = jnp.zeros_like(acc_ref)
            vsq_ref[...] = jnp.zeros_like(vsq_ref)

        if x_resident:
            # x was DMA'd once (constant block index); slice the current K chunk in VMEM.
            start = pl.multiple_of(k * tk, tk)
            x_blk = x_ref[:, pl.ds(start, tk)]
        else:
            x_blk = x_ref[...]
        v_blk = v_ref[...]

        # (B, TK) x (TN, TK) -> (B, TN): contract K of both operands, so the weight-normed
        # weight is never materialized or transposed; MXU accumulates in f32.
        acc_ref[...] += jax.lax.dot_general(
            x_blk, v_blk,
            dimension_numbers=(((1,), (1,)), ((), ())),
            preferred_element_type=jnp.float32,
        )

        # Fused weight-norm row-norm: per-feature sum of squares of this v tile.
        # ones(1, TK) @ (v*v)^T yields the (1, TN) lane layout directly; the square is VPU
        # work hidden under the v-tile DMA and the matmul has M=1 (negligible MXU cost).
        # (Any rounding in s cancels through BN, which divides by the same scale.)
        v32 = v_blk.astype(jnp.float32)
        ones_row = jnp.ones((1, tk), dtype=jnp.float32)
        vsq_ref[...] += jax.lax.dot_general(
            ones_row, v32 * v32,
            dimension_numbers=(((1,), (1,)), ((), ())),
            preferred_element_type=jnp.float32,
        )

        @pl.when(k == pl.num_programs(1) - 1)
        def _epilogue():
            nb = acc_ref.shape[0]
            acc = acc_ref[...]                       # (B, TN) = x @ v^T (unscaled)
            g = p_ref[0:1, :]                        # (1, TN) weight-norm magnitude
            gamma = p_ref[1:2, :]                    # (1, TN)
            beta = p_ref[2:3, :]                     # (1, TN)

            s = g * jax.lax.rsqrt(vsq_ref[...])      # g / ||v||  (EUP rsqrt)

            # BatchNorm1d training-mode stats over the full batch (kept whole in-tile).
            inv_b = 1.0 / nb
            mean = jnp.sum(acc, axis=0, keepdims=True) * inv_b
            centered = acc - mean
            var = jnp.sum(centered * centered, axis=0, keepdims=True) * inv_b

            # BN(s*acc + bias): bias cancels exactly; fold s into the affine so the big
            # (B, TN) tile is touched once -> one mul + one add per output element.
            scale = gamma * s * jax.lax.rsqrt(s * s * var + BN_EPS)   # (1, TN)
            shift = beta - mean * scale                               # (1, TN)
            o_ref[...] = (acc * scale + shift).astype(o_ref.dtype)

    return kernel


def _divisor_tile(dim, cap, min_tiles=1):
    """Largest 128-aligned divisor of `dim` <= cap giving >= min_tiles tiles.

    Falls back to fewer tiles, then to the full (possibly unaligned) dim.
    """
    if dim % 128 != 0:
        return dim  # non-aligned dim: keep whole (full-dim escape hatch, masked stores)
    best = None
    t = 128
    while t <= min(cap, dim):
        if dim % t == 0 and dim // t >= min_tiles:
            best = t
        t += 128
    if best is None:
        t = 128
        while t <= min(cap, dim):
            if dim % t == 0:
                best = t
            t += 128
    return best if best is not None else dim


def linear_norm_forward(x, v, g, bias, gamma, beta, *, tn=None, tk=None):
    """Forward of LinearNorm: BatchNorm1d(weight_norm(Linear)(x)), training-mode stats.

    x: (B, In). v: (Out, In) weight_norm direction, g: (Out,) magnitude,
    bias/gamma/beta: (Out,).  MXU runs in x.dtype (bf16 or f32); epilogue is f32.
    `bias` is accepted for API parity but cancels exactly through training-mode BN.
    """
    B, In = x.shape
    Out, In2 = v.shape
    assert In == In2

    compute_dtype = x.dtype
    itemsize = jnp.dtype(compute_dtype).itemsize
    out_itemsize = jnp.dtype(x.dtype).itemsize
    del bias  # mathematically a no-op through training-mode BN (see TODO at top)

    # Packed per-feature params: one (3, Out) array -> single DMA per Out tile.
    params = jnp.stack(
        [g.astype(jnp.float32), gamma.astype(jnp.float32), beta.astype(jnp.float32)],
        axis=0,
    )

    # Tile selection: lane aligned, >=2 Out tiles when possible (v7x megacore), cap 1024.
    if tn is None:
        tn = _divisor_tile(Out, cap=1024, min_tiles=2 if Out >= 256 else 1)
    if tk is None:
        tk = _divisor_tile(In, cap=1024, min_tiles=1)
    assert Out % tn == 0 and In % tk == 0
    assert tn == Out or tn % 128 == 0, "Out tile must be lane aligned"
    assert tk == In or tk % 128 == 0, "K tile must be lane aligned"

    n_j, n_k = Out // tn, In // tk

    # Keep x VMEM-resident (one DMA total) when it would otherwise be re-streamed per Out
    # tile and it comfortably fits the budget.
    x_bytes = B * In * itemsize
    x_resident = (n_k > 1) and (n_j > 1) and (x_bytes <= 8 * 1024 * 1024)

    # VMEM footprint (double-buffered inputs/outputs + scratch) -> explicit vmem limit.
    footprint = (
        2 * tn * tk * itemsize                                        # v tiles
        + (2 * x_bytes if x_resident else 2 * B * tk * itemsize)      # x
        + 2 * B * tn * out_itemsize                                   # out tiles
        + B * tn * 4 + tn * 4                                         # acc + vsq scratch
        + 2 * 8 * tn * 4                                              # params (sublane-padded)
    )
    assert footprint <= 56 * 1024 * 1024, (
        "VMEM footprint too large; reduce tn/tk (the batch axis must stay whole for exact "
        "BatchNorm statistics)")
    vmem_limit = min(max(int(footprint) + (4 << 20), 32 << 20), 64 << 20)

    x_spec = (pl.BlockSpec((B, In), lambda j, k: (0, 0)) if x_resident
              else pl.BlockSpec((B, tk), lambda j, k: (0, k)))

    out = pl.pallas_call(
        _make_kernel(tk, x_resident),
        out_shape=jax.ShapeDtypeStruct((B, Out), x.dtype),
        grid=(n_j, n_k),  # reduction (K) axis last
        in_specs=[
            x_spec,                                          # x
            pl.BlockSpec((tn, tk), lambda j, k: (j, k)),     # v (dominant HBM stream)
            pl.BlockSpec((3, tn), lambda j, k: (0, j)),      # packed [g, gamma, beta]
        ],
        out_specs=pl.BlockSpec((B, tn), lambda j, k: (0, j)),
        scratch_shapes=[
            pltpu.VMEM((B, tn), jnp.float32),                # matmul accumulator
            pltpu.VMEM((1, tn), jnp.float32),                # sum(v^2) per feature
        ],
        compiler_params=pltpu.CompilerParams(
            # Out tiles are independent (BN is per-feature) -> shard across TCs on v7x;
            # K accumulates into resident scratch -> arbitrary.
            dimension_semantics=("parallel", "arbitrary"),
            vmem_limit_bytes=vmem_limit,
        ),
        cost_estimate=pl.CostEstimate(
            flops=2 * B * In * Out + 2 * Out * In,
            transcendentals=2 * Out,
            bytes_accessed=(B * In + Out * In) * itemsize
            + B * Out * out_itemsize + 3 * Out * 4,
        ),
    )(x.astype(compute_dtype), v.astype(compute_dtype), params)
    return out


def _reference(x, v, g, bias, gamma, beta):
    x32 = x.astype(jnp.float32)
    v32 = v.astype(jnp.float32)
    w = g[:, None] * v32 / jnp.sqrt(jnp.sum(v32 ** 2, axis=1, keepdims=True))
    y = jnp.dot(x32, w.T, precision=jax.lax.Precision.HIGHEST) + bias[None, :]
    mean = jnp.mean(y, axis=0, keepdims=True)
    var = jnp.mean((y - mean) ** 2, axis=0, keepdims=True)
    return gamma[None, :] * (y - mean) / jnp.sqrt(var + BN_EPS) + beta[None, :]


if __name__ == "__main__":
    key = jax.random.PRNGKey(0)
    B, In, Out = 8, 512, 512

    k_x, k_v, k_b = jax.random.split(key, 3)
    x = jax.random.normal(k_x, (B, In), dtype=jnp.float32)

    # Parameter shapes/init from nn.Linear(In, Out) + weight_norm + BatchNorm1d(Out).
    bound = In ** -0.5
    v = jax.random.uniform(k_v, (Out, In), minval=-bound, maxval=bound, dtype=jnp.float32)
    g = jnp.sqrt(jnp.sum(v ** 2, axis=1))            # weight_norm init: g = ||v||
    bias = jax.random.uniform(k_b, (Out,), minval=-bound, maxval=bound, dtype=jnp.float32)
    gamma = jnp.ones((Out,), dtype=jnp.float32)      # BN affine init
    beta = jnp.zeros((Out,), dtype=jnp.float32)

    ref = _reference(x, v, g, bias, gamma, beta)

    # 1) f32, default tiling (Out split into 2 tiles for v7x megacore; single K tile).
    # Tolerance accounts for MXU default-precision f32 matmul (reference uses HIGHEST).
    out = jax.block_until_ready(linear_norm_forward(x, v, g, bias, gamma, beta))
    assert out.shape == (B, Out)
    err = float(jnp.max(jnp.abs(out - ref)))
    assert err < 2e-2, f"f32 default-tiling mismatch vs reference: {err}"

    # 2) f32, explicit tn/tk -> exercises multi-K accumulation + resident-x path.
    out2 = jax.block_until_ready(
        linear_norm_forward(x, v, g, bias, gamma, beta, tn=256, tk=256))
    err2 = float(jnp.max(jnp.abs(out2 - ref)))
    assert err2 < 2e-2, f"f32 tiled mismatch vs reference: {err2}"

    # 3) bf16 MXU operands (f32 accumulate + f32 BN epilogue inside the kernel).
    out_bf16 = jax.block_until_ready(
        linear_norm_forward(x.astype(jnp.bfloat16), v.astype(jnp.bfloat16),
                            g, bias, gamma, beta))
    assert out_bf16.shape == (B, Out)
    err_bf16 = float(jnp.max(jnp.abs(out_bf16.astype(jnp.float32) - ref)))
    assert err_bf16 < 3e-1, f"bf16 mismatch vs reference: {err_bf16}"

    print("KERNEL_OK")
</pallas_src>

<mosaic_0001>
module attributes {stable_mosaic.version = 11 : i64} {
  func.func @kernel(%arg0: i32, %arg1: i32, %arg2: memref<8x512xf32, #tpu.memory_space<vmem>>, %arg3: memref<256x512xf32, #tpu.memory_space<vmem>>, %arg4: memref<3x256xf32, #tpu.memory_space<vmem>>, %arg5: memref<8x256xf32, #tpu.memory_space<vmem>>, %arg6: memref<8x256xf32, #tpu.memory_space<vmem>>, %arg7: memref<1x256xf32, #tpu.memory_space<vmem>>) attributes {dimension_semantics = [#tpu.dimension_semantics<parallel>, #tpu.dimension_semantics<arbitrary>], iteration_bounds = array<i64: 2, 1>, scalar_prefetch = 0 : i64, scratch_operands = 2 : i64, tpu.core_type = #tpu.core_type<tc>, window_params = [{transform_indices = @transform_0, window_bounds = array<i64: 8, 512>}, {transform_indices = @transform_1, window_bounds = array<i64: 256, 512>}, {transform_indices = @transform_2, window_bounds = array<i64: 3, 256>}, {transform_indices = @transform_3, window_bounds = array<i64: 8, 256>}]} {
    %c0_i32 = arith.constant 0 : i32
    %0 = arith.cmpi eq, %arg1, %c0_i32 : i32
    %1 = arith.extui %0 : i1 to i32
    %c0_i32_0 = arith.constant 0 : i32
    %2 = arith.cmpi ne, %1, %c0_i32_0 : i32
    scf.if %2 {
      %cst_16 = arith.constant 0.000000e+00 : f32
      %18 = vector.broadcast %cst_16 : f32 to vector<8x256xf32>
      %c0_17 = arith.constant 0 : index
      %c0_18 = arith.constant 0 : index
      %19 = vector.load %arg6[%c0_17, %c0_18] : memref<8x256xf32, #tpu.memory_space<vmem>>, vector<8x256xf32>
      tpu.vector_store %arg6[%c0_17, %c0_18], %18 {strides = array<i32>} : memref<8x256xf32, #tpu.memory_space<vmem>>, vector<8x256xf32>,
      %cst_19 = arith.constant 0.000000e+00 : f32
      %20 = vector.broadcast %cst_19 : f32 to vector<1x256xf32>
      %c0_20 = arith.constant 0 : index
      %c0_21 = arith.constant 0 : index
      %21 = vector.load %arg7[%c0_20, %c0_21] : memref<1x256xf32, #tpu.memory_space<vmem>>, vector<1x256xf32>
      tpu.vector_store %arg7[%c0_20, %c0_21], %20 {strides = array<i32>} : memref<1x256xf32, #tpu.memory_space<vmem>>, vector<1x256xf32>,
    } else {
    }
    %c0 = arith.constant 0 : index
    %c0_1 = arith.constant 0 : index
    %3 = vector.load %arg2[%c0, %c0_1] : memref<8x512xf32, #tpu.memory_space<vmem>>, vector<8x512xf32>
    %c0_2 = arith.constant 0 : index
    %c0_3 = arith.constant 0 : index
    %4 = vector.load %arg3[%c0_2, %c0_3] : memref<256x512xf32, #tpu.memory_space<vmem>>, vector<256x512xf32>
    %c0_4 = arith.constant 0 : index
    %c0_5 = arith.constant 0 : index
    %5 = vector.load %arg6[%c0_4, %c0_5] : memref<8x256xf32, #tpu.memory_space<vmem>>, vector<8x256xf32>
    %cst = arith.constant dense<0.000000e+00> : vector<8x256xf32>
    %6 = tpu.matmul %3, %4, %cst {dimension_numbers = #tpu.dot_dimension_numbers<[1], [1], [0], [0], [0, 0, 1, 0], [], []>} : vector<8x512xf32>, vector<256x512xf32>, vector<8x256xf32> -> vector<8x256xf32>
    %7 = arith.addf %5, %6 : vector<8x256xf32>
    %c0_6 = arith.constant 0 : index
    %c0_7 = arith.constant 0 : index
    %8 = vector.load %arg6[%c0_6, %c0_7] : memref<8x256xf32, #tpu.memory_space<vmem>>, vector<8x256xf32>
    tpu.vector_store %arg6[%c0_6, %c0_7], %7 {strides = array<i32>} : memref<8x256xf32, #tpu.memory_space<vmem>>, vector<8x256xf32>,
    %cst_8 = arith.constant 1.000000e+00 : f32
    %9 = vector.broadcast %cst_8 : f32 to vector<1x512xf32>
    %c0_9 = arith.constant 0 : index
    %c0_10 = arith.constant 0 : index
    %10 = vector.load %arg7[%c0_9, %c0_10] : memref<1x256xf32, #tpu.memory_space<vmem>>, vector<1x256xf32>
    %11 = arith.mulf %4, %4 : vector<256x512xf32>
    %cst_11 = arith.constant dense<0.000000e+00> : vector<1x256xf32>
    %12 = tpu.matmul %9, %11, %cst_11 {dimension_numbers = #tpu.dot_dimension_numbers<[1], [1], [0], [0], [0, 0, 1, 0], [], []>} : vector<1x512xf32>, vector<256x512xf32>, vector<1x256xf32> -> vector<1x256xf32>
    %13 = arith.addf %10, %12 : vector<1x256xf32>
    %c0_12 = arith.constant 0 : index
    %c0_13 = arith.constant 0 : index
    %14 = vector.load %arg7[%c0_12, %c0_13] : memref<1x256xf32, #tpu.memory_space<vmem>>, vector<1x256xf32>
    tpu.vector_store %arg7[%c0_12, %c0_13], %13 {strides = array<i32>} : memref<1x256xf32, #tpu.memory_space<vmem>>, vector<1x256xf32>,
    %c0_i32_14 = arith.constant 0 : i32
    %15 = arith.cmpi eq, %arg1, %c0_i32_14 : i32
    %16 = arith.extui %15 : i1 to i32
    %c0_i32_15 = arith.constant 0 : i32
    %17 = arith.cmpi ne, %16, %c0_i32_15 : i32
    scf.if %17 {
      %c0_16 = arith.constant 0 : index
      %c0_17 = arith.constant 0 : index
      %18 = vector.load %arg6[%c0_16, %c0_17] : memref<8x256xf32, #tpu.memory_space<vmem>>, vector<8x256xf32>
      %c0_18 = arith.constant 0 : index
      %c0_19 = arith.constant 0 : index
      %19 = vector.load %arg4[%c0_18, %c0_19] : memref<3x256xf32, #tpu.memory_space<vmem>>, vector<1x256xf32>
      %c1 = arith.constant 1 : index
      %c0_20 = arith.constant 0 : index
      %20 = vector.load %arg4[%c1, %c0_20] : memref<3x256xf32, #tpu.memory_space<vmem>>, vector<1x256xf32>
      %c2 = arith.constant 2 : index
      %c0_21 = arith.constant 0 : index
      %21 = vector.load %arg4[%c2, %c0_21] : memref<3x256xf32, #tpu.memory_space<vmem>>, vector<1x256xf32>
      %c0_22 = arith.constant 0 : index
      %c0_23 = arith.constant 0 : index
      %22 = vector.load %arg7[%c0_22, %c0_23] : memref<1x256xf32, #tpu.memory_space<vmem>>, vector<1x256xf32>
      %23 = math.rsqrt %22 : vector<1x256xf32>
      %24 = arith.mulf %19, %23 : vector<1x256xf32>
      %cst_24 = arith.constant dense<0.000000e+00> : vector<256xf32>
      %25 = vector.multi_reduction <add>, %18, %cst_24 [0] : vector<8x256xf32> to vector<256xf32>
      %26 = vector.shape_cast %25 : vector<256xf32> to vector<1x256xf32>
      %cst_25 = arith.constant 1.250000e-01 : f32
      %27 = vector.broadcast %cst_25 : f32 to vector<1x256xf32>
      %28 = arith.mulf %26, %27 : vector<1x256xf32>
      %29 = vector.broadcast %28 : vector<1x256xf32> to vector<8x256xf32>
      %30 = arith.subf %18, %29 : vector<8x256xf32>
      %31 = arith.mulf %30, %30 : vector<8x256xf32>
      %cst_26 = arith.constant dense<0.000000e+00> : vector<256xf32>
      %32 = vector.multi_reduction <add>, %31, %cst_26 [0] : vector<8x256xf32> to vector<256xf32>
      %33 = vector.shape_cast %32 : vector<256xf32> to vector<1x256xf32>
      %cst_27 = arith.constant 1.250000e-01 : f32
      %34 = vector.broadcast %cst_27 : f32 to vector<1x256xf32>
      %35 = arith.mulf %33, %34 : vector<1x256xf32>
      %36 = arith.mulf %20, %24 : vector<1x256xf32>
      %37 = arith.mulf %24, %24 : vector<1x256xf32>
      %38 = arith.mulf %37, %35 : vector<1x256xf32>
      %cst_28 = arith.constant 9.99999974E-6 : f32
      %39 = vector.broadcast %cst_28 : f32 to vector<1x256xf32>
      %40 = arith.addf %38, %39 : vector<1x256xf32>
      %41 = math.rsqrt %40 : vector<1x256xf32>
      %42 = arith.mulf %36, %41 : vector<1x256xf32>
      %43 = arith.mulf %28, %42 : vector<1x256xf32>
      %44 = arith.subf %21, %43 : vector<1x256xf32>
      %45 = vector.broadcast %42 : vector<1x256xf32> to vector<8x256xf32>
      %46 = arith.mulf %18, %45 : vector<8x256xf32>
      %47 = vector.broadcast %44 : vector<1x256xf32> to vector<8x256xf32>
      %48 = arith.addf %46, %47 : vector<8x256xf32>
      %c0_29 = arith.constant 0 : index
      %c0_30 = arith.constant 0 : index
      %49 = vector.load %arg5[%c0_29, %c0_30] : memref<8x256xf32, #tpu.memory_space<vmem>>, vector<8x256xf32>
      tpu.vector_store %arg5[%c0_29, %c0_30], %48 {strides = array<i32>} : memref<8x256xf32, #tpu.memory_space<vmem>>, vector<8x256xf32>,
    } else {
    }
    return
  }
  func.func @transform_0(%arg0: i32, %arg1: i32) -> (i32, i32) {
    %c0_i32 = arith.constant 0 : i32
    %c0_i32_0 = arith.constant 0 : i32
    return %c0_i32, %arg1 : i32, i32
  }
  func.func @transform_1(%arg0: i32, %arg1: i32) -> (i32, i32) {
    %c0_i32 = arith.constant 0 : i32
    return %arg0, %arg1 : i32, i32
  }
  func.func @transform_2(%arg0: i32, %arg1: i32) -> (i32, i32) {
    %c0_i32 = arith.constant 0 : i32
    %c0_i32_0 = arith.constant 0 : i32
    return %c0_i32, %arg0 : i32, i32
  }
  func.func @transform_3(%arg0: i32, %arg1: i32) -> (i32, i32) {
    %c0_i32 = arith.constant 0 : i32
    %c0_i32_0 = arith.constant 0 : i32
    return %c0_i32, %arg0 : i32, i32
  }
}

</mosaic_0001>

<llo_original>
// kernel: tpu_custom_call.1
$region0: #{tpu_custom_call.1}
  #allocation0 [shape = 'u32[]', space=smem, size = 0x4, offset = 0x4, fixed_abs, tag = 'smem constant byte address 0x4 - core index']
  #allocation1 [shape = 'u32[144,128]{1,0:T(1,128)}', space=vmem, size = 0x12000, scoped, tag = 'internal scratch']
  #allocation2 [shape = 'f32[8,256]{1,0:T(8,128)}', space=vmem, size = 0x2000, scoped, tag = 'scratch operand']
  #allocation3 [shape = 'f32[1,256]{1,0:T(1,128)}', space=vmem, size = 0x400, scoped, tag = 'scratch operand']
  %s0 = inlined_call_operand.hbm [shape: f32[8,512], index: 0, kind: input, shape index: {}]
  %s1 = inlined_call_operand.hbm [shape: f32[512,512], index: 1, kind: input, shape index: {}]
  %s2 = inlined_call_operand.hbm [shape: f32[3,512], index: 2, kind: input, shape index: {}]
  %s3 = inlined_call_operand.hbm [shape: f32[8,512], index: 3, kind: output, shape index: {}]
  %s4 = sld [smem:[#allocation0]]
  $region65: #{tpu_custom_call.1} parent=0
    _
  %s6 = ssub.s32 1, %s4
  %s7 = scalar_select 0, %s6, %s4
  $region1: #{tpu_custom_call.1} parent=0
    #allocation4 [shape = 'u8[16384]{0}', space=vmem, size = 0x4000, scoped, tag = 'input window, operand 0, single buffered']
    #allocation5 [shape = 's32[2]{0}', space=sflag, size = 0x8, scoped, tag = 'scoped memory for tpu_custom_call.1']
    #allocation6 [shape = 's32[2]{0}', space=sflag, size = 0x8, scoped, tag = 'scoped memory for tpu_custom_call.1']
    #allocation7 [shape = 'u8[1048576]{0}', space=vmem, size = 0x100000, scoped, tag = 'input window, operand 1']
    #allocation8 [shape = 's32[2]{0}', space=sflag, size = 0x8, scoped, tag = 'scoped memory for tpu_custom_call.1']
    #allocation9 [shape = 'u8[8192]{0}', space=vmem, size = 0x2000, scoped, tag = 'input window, operand 2']
    #allocation10 [shape = 'u8[16384]{0}', space=vmem, size = 0x4000, scoped, tag = 'output window, operand 0']
    %8 = vsyncpa [#allocation5], 0
    %9 = vsyncpa [#allocation8], 0
    %s10 = scalar_lea.sflag [#allocation8], 1
    %11 = vsyncpa %s10, 0
    %12 = vsyncpa [#allocation6], 0
    %s13 = scalar_lea.sflag [#allocation6], 1
    %14 = vsyncpa %s13, 0
    loop: start=0, step=1, limit=4
    $region2: #{tpu_custom_call.1} parent=1 // loop_pre_header
      _
    $region3: #{tpu_custom_call.1} parent=1 // loop_header
      %s16 = sphi 0, %s20
      %p17 = scmp.ge.s32.totalorder %s16, 4
      %s23 = sphi 0, %s35
      %s24 = sphi 0, %s31
      %s25 = sphi 0, %s23
      %s26 = sphi 0, %s24
      %s27 = sphi 0, %s25
      %s28 = sphi 0, %s26
      %s38 = sphi 0, %s40
      %s41 = sphi 0, %s38
      %s42 = sphi 0, %s41
      %s58 = sphi 0, %s42
      %s66 = sphi 0, %s68
      %s69 = sphi 0, %s66
      %s70 = sphi 0, %s69
      %s86 = sphi 0, %s70
      %s92 = sphi 0, %s94
      %s95 = sphi 0, %s92
      %s96 = sphi 0, %s95
      %s112 = sphi 0, %s96
      %s118 = sphi 0, %s120
      %s121 = sphi 0, %s118
      %s122 = sphi 0, %s121
      %s138 = sphi 0, %s122
    $region4: #{tpu_custom_call.1} parent=1 // loop_header_branch
      %19 = sbr.rel (%p17) target = $region8
    $region5: #{tpu_custom_call.1} parent=1 // loop_body
      %s21 = ssub.s32 %s16, 1
      %s22 = ssub.s32 %s16, 2
      %s29 = sadd.s32 1, %s24
      %p30 = scmp.ge.s32.totalorder %s29, 1
      %s31 = scalar_select %p30, 0, %s29
      %s32 = sadd.s32 1, %s23
      %s33 = scalar_select %p30, %s32, %s23
      %p34 = scmp.ge.s32.totalorder %s33, 2
      %s35 = scalar_select %p34, 0, %s33
      %s36 = ssub.s32 %s24, %s31
      %p37 = scmp.eq.s32.totalorder %s36, 0
      %s39 = sadd.s32 %s38, 1
      %s40 = scalar_select %p37, %s38, %s39
      %p43 = pneg %p37
      %p44 = scmp.eq.s32.totalorder %s16, 1
      %p45 = por %p43, %p44
      %p46 = scmp.ne.s32.totalorder %s38, %s41
      %p47 = scmp.eq.s32.totalorder %s16, 0
      %p48 = por %p46, %p47
      %p49 = scmp.ne.s32.totalorder %s38, %s41
      %p50 = scmp.eq.s32.totalorder %s21, 1
      %p51 = por %p49, %p50
      %p52 = scmp.ne.s32.totalorder %s41, %s42
      %p53 = scmp.eq.s32.totalorder %s21, 0
      %p54 = por %p52, %p53
      %p55 = scmp.ne.s32.totalorder %s41, %s42
      %p56 = scmp.eq.s32.totalorder %s22, 1
      %p57 = por %p55, %p56
      %p59 = scmp.ne.s32.totalorder %s42, %s58
      %p60 = scmp.eq.s32.totalorder %s22, 0
      %p61 = por %p59, %p60
      %s62 = ssub.s32 %s23, %s35
      %s63 = ssub.s32 %s24, %s31
      %s64 = sor.u32 %s62, %s63
      %p65 = scmp.eq.s32.totalorder %s64, 0
      %s67 = sadd.s32 %s66, 1
      %s68 = scalar_select %p65, %s66, %s67
      %p71 = pneg %p65
      %p72 = scmp.eq.s32.totalorder %s16, 1
      %p73 = por %p71, %p72
      %p74 = scmp.ne.s32.totalorder %s66, %s69
      %p75 = scmp.eq.s32.totalorder %s16, 0
      %p76 = por %p74, %p75
      %p77 = scmp.ne.s32.totalorder %s66, %s69
      %p78 = scmp.eq.s32.totalorder %s21, 1
      %p79 = por %p77, %p78
      %p80 = scmp.ne.s32.totalorder %s69, %s70
      %p81 = scmp.eq.s32.totalorder %s21, 0
      %p82 = por %p80, %p81
      %p83 = scmp.ne.s32.totalorder %s69, %s70
      %p84 = scmp.eq.s32.totalorder %s22, 1
      %p85 = por %p83, %p84
      %p87 = scmp.ne.s32.totalorder %s70, %s86
      %p88 = scmp.eq.s32.totalorder %s22, 0
      %p89 = por %p87, %p88
      %s90 = ssub.s32 %s23, %s35
      %p91 = scmp.eq.s32.totalorder %s90, 0
      %s93 = sadd.s32 %s92, 1
      %s94 = scalar_select %p91, %s92, %s93
      %p97 = pneg %p91
      %p98 = scmp.eq.s32.totalorder %s16, 1
      %p99 = por %p97, %p98
      %p100 = scmp.ne.s32.totalorder %s92, %s95
      %p101 = scmp.eq.s32.totalorder %s16, 0
      %p102 = por %p100, %p101
      %p103 = scmp.ne.s32.totalorder %s92, %s95
      %p104 = scmp.eq.s32.totalorder %s21, 1
      %p105 = por %p103, %p104
      %p106 = scmp.ne.s32.totalorder %s95, %s96
      %p107 = scmp.eq.s32.totalorder %s21, 0
      %p108 = por %p106, %p107
      %p109 = scmp.ne.s32.totalorder %s95, %s96
      %p110 = scmp.eq.s32.totalorder %s22, 1
      %p111 = por %p109, %p110
      %p113 = scmp.ne.s32.totalorder %s96, %s112
      %p114 = scmp.eq.s32.totalorder %s22, 0
      %p115 = por %p113, %p114
      %s116 = ssub.s32 %s23, %s35
      %p117 = scmp.eq.s32.totalorder %s116, 0
      %s119 = sadd.s32 %s118, 1
      %s120 = scalar_select %p117, %s118, %s119
      %p123 = pneg %p117
      %p124 = scmp.eq.s32.totalorder %s16, 1
      %p125 = por %p123, %p124
      %p126 = scmp.ne.s32.totalorder %s118, %s121
      %p127 = scmp.eq.s32.totalorder %s16, 0
      %p128 = por %p126, %p127
      %p129 = scmp.ne.s32.totalorder %s118, %s121
      %p130 = scmp.eq.s32.totalorder %s21, 1
      %p131 = por %p129, %p130
      %p132 = scmp.ne.s32.totalorder %s121, %s122
      %p133 = scmp.eq.s32.totalorder %s21, 0
      %p134 = por %p132, %p133
      %p135 = scmp.ne.s32.totalorder %s121, %s122
      %p136 = scmp.eq.s32.totalorder %s22, 1
      %p137 = por %p135, %p136
      %p139 = scmp.ne.s32.totalorder %s122, %s138
      %p140 = scmp.eq.s32.totalorder %s22, 0
      %p141 = por %p139, %p140
      %p142 = scmp.le.s32.totalorder 1, %s16
      %p143 = scmp.lt.s32.totalorder %s16, 3
      %p144 = pnand %p142, %p143
      %p145 = pneg %p144
      // Predicated region
      $region9: #{tpu_custom_call.1} parent=5 // pred_check
        _
      $region10: #{tpu_custom_call.1} parent=5 // pred_check_branch
        %147 = sbr.rel (%p144) target = $region12
      $region11: #{tpu_custom_call.1} parent=5 // pred_region
        %s148 = ssub.s32 %s16, 1
        // Predicated region
        $region13: #{tpu_custom_call.1} parent=11 // pred_check
          %p149 = pneg %p54
        $region14: #{tpu_custom_call.1} parent=11 // pred_check_branch
          %151 = sbr.rel (%p149) target = $region16
        $region15: #{tpu_custom_call.1} parent=11 // pred_region
          %s152 = smul.u32 4, %s26
          %s154 = ssub.s32 512, 512
          %155 = vsyncadd [#allocation5], %s154
          %s156 = smul.addr %s152, 128
          %s157 = scalar_lea.hbm %s0, %s156
          %s159 = sshll.u32 [#allocation4], 4
          %s160 = int_to_ptr.vmem [resolvable:$true] %s159
          %162 = dma.hbm_to_vmem [thread:$0]  %s157, 512, %s160, [#allocation5]
        $region16: #{tpu_custom_call.1} parent=11 // pred_fallthru
          _
      $region12: #{tpu_custom_call.1} parent=5 // pred_fallthru
        _
      %p163 = scmp.lt.s32.totalorder %s16, 2
      // Predicated region
      $region17: #{tpu_custom_call.1} parent=5 // pred_check
        %p164 = pneg %p163
      $region18: #{tpu_custom_call.1} parent=5 // pred_check_branch
        %166 = sbr.rel (%p164) target = $region20
      $region19: #{tpu_custom_call.1} parent=5 // pred_region
        // Predicated region
        $region21: #{tpu_custom_call.1} parent=19 // pred_check
          %p167 = pneg %p76
        $region22: #{tpu_custom_call.1} parent=19 // pred_check_branch
          %169 = sbr.rel (%p167) target = $region24
        $region23: #{tpu_custom_call.1} parent=19 // pred_region
          %s170 = sand.u32 %s16, 1
          %s171 = scalar_lea.sflag [#allocation8], %s170
          %s172 = sand.u32 %s66, 1
          %s173 = smul.addr %s172, 1024
          %s174 = scalar_lea.vmem [#allocation7], %s173
          %s175 = smul.u32 32, %s23
          %s176 = smul.u32 4, %s24
          %s178 = ssub.s32 16384, 16384
          %179 = vsyncadd %s171, %s178
          %s180 = smul.addr %s175, 4
          %s181 = sadd.s32 %s176, %s180
          %s182 = smul.addr %s181, 128
          %s183 = scalar_lea.hbm %s1, %s182
          %s184 = sshll.u32 %s174, 4
          %s185 = int_to_ptr.vmem [resolvable:$true] %s184
          %190 = dma.hbm_to_vmem [thread:$0]  %s183, 16384, %s185, %s171, 512, 512, 32
        $region24: #{tpu_custom_call.1} parent=19 // pred_fallthru
          _
        // Predicated region
        $region25: #{tpu_custom_call.1} parent=19 // pred_check
          %p191 = pneg %p102
        $region26: #{tpu_custom_call.1} parent=19 // pred_check_branch
          %193 = sbr.rel (%p191) target = $region28
        $region27: #{tpu_custom_call.1} parent=19 // pred_region
          %s194 = sand.u32 %s16, 1
          %s195 = scalar_lea.sflag [#allocation8], %s194
          %s196 = sand.u32 %s92, 1
          %s197 = smul.addr %s196, 8
          %s198 = scalar_lea.vmem [#allocation9], %s197
          %s199 = smul.u32 2, %s23
          %s201 = ssub.s32 128, 128
          %202 = vsyncadd %s195, %s201
          %s203 = smul.addr %s199, 64
          %s204 = scalar_lea.hbm %s2, %s203
          %s206 = sshll.u32 %s198, 4
          %s207 = int_to_ptr.vmem [resolvable:$true] %s206
          %209 = dma.hbm_to_vmem [thread:$0]  %s204, 128, %s207, %s195
        $region28: #{tpu_custom_call.1} parent=19 // pred_fallthru
          _
      $region20: #{tpu_custom_call.1} parent=5 // pred_fallthru
        _
      %p210 = scmp.le.s32.totalorder 1, %s16
      %p211 = scmp.lt.s32.totalorder %s16, 3
      %p212 = pnand %p210, %p211
      %p213 = pneg %p212
      // Predicated region
      $region29: #{tpu_custom_call.1} parent=5 // pred_check
        _
      $region30: #{tpu_custom_call.1} parent=5 // pred_check_branch
        %215 = sbr.rel (%p212) target = $region32
      $region31: #{tpu_custom_call.1} parent=5 // pred_region
        %s216 = ssub.s32 %s16, 1
        // Predicated region
        $region33: #{tpu_custom_call.1} parent=31 // pred_check
          %p217 = pneg %p54
        $region34: #{tpu_custom_call.1} parent=31 // pred_check_branch
          %219 = sbr.rel (%p217) target = $region36
        $region35: #{tpu_custom_call.1} parent=31 // pred_region
          %220 = dma.done [#allocation5], 512
        $region36: #{tpu_custom_call.1} parent=31 // pred_fallthru
          _
        %s221 = sand.u32 %s21, 1
        %s222 = scalar_lea.sflag [#allocation8], %s221
        %s223 = sand.u32 %s69, 1
        %s224 = smul.addr %s223, 1024
        %s225 = scalar_lea.vmem [#allocation7], %s224
        // Predicated region
        $region37: #{tpu_custom_call.1} parent=31 // pred_check
          %p226 = pneg %p82
        $region38: #{tpu_custom_call.1} parent=31 // pred_check_branch
          %228 = sbr.rel (%p226) target = $region40
        $region39: #{tpu_custom_call.1} parent=31 // pred_region
          %229 = dma.done %s222, 16384
        $region40: #{tpu_custom_call.1} parent=31 // pred_fallthru
          _
        %s230 = sand.u32 %s21, 1
        %s231 = scalar_lea.sflag [#allocation8], %s230
        %s232 = sand.u32 %s95, 1
        %s233 = smul.addr %s232, 8
        %s234 = scalar_lea.vmem [#allocation9], %s233
        // Predicated region
        $region41: #{tpu_custom_call.1} parent=31 // pred_check
          %p235 = pneg %p108
        $region42: #{tpu_custom_call.1} parent=31 // pred_check_branch
          %237 = sbr.rel (%p235) target = $region44
        $region43: #{tpu_custom_call.1} parent=31 // pred_region
          %238 = dma.done %s231, 128
        $region44: #{tpu_custom_call.1} parent=31 // pred_fallthru
          _
        %p239 = pneg %p54
        %p240 = pneg %p51
        %s241 = sand.u32 %s21, 1
        %s242 = scalar_lea.sflag [#allocation8], %s241
        %s243 = sand.u32 %s69, 1
        %s244 = smul.addr %s243, 1024
        %s245 = scalar_lea.vmem [#allocation7], %s244
        %p246 = pneg %p82
        %p247 = pneg %p79
        %s248 = sand.u32 %s21, 1
        %s249 = scalar_lea.sflag [#allocation8], %s248
        %s250 = sand.u32 %s95, 1
        %s251 = smul.addr %s250, 8
        %s252 = scalar_lea.vmem [#allocation9], %s251
        %p253 = pneg %p108
        %p254 = pneg %p105
        %p255 = pneg %p134
        %p256 = pneg %p131
        %s257 = sand.u32 %s121, 1
        %s258 = scalar_lea.sflag [#allocation6], %s257
        %s259 = sand.u32 %s121, 1
        %s260 = smul.addr %s259, 16
        %s261 = scalar_lea.vmem [#allocation10], %s260
        %s262 = smul.u32 4, %s26
        %s263 = smul.u32 32, %s25
        %s264 = smul.u32 4, %s26
        %s265 = smul.u32 2, %s25
        %s266 = smul.u32 2, %s25
        %p267 = scmp.eq.s32.totalorder %s26, 0
        // Predicated region
        $region45: #{tpu_custom_call.1} parent=31 // pred_check
          %p268 = pneg %p267
        $region46: #{tpu_custom_call.1} parent=31 // pred_check_branch
          %270 = sbr.rel (%p268) target = $region48
        $region47: #{tpu_custom_call.1} parent=31 // pred_region
          %271 = vst [vmem:[#allocation2] sm:$0xff] 0.0
          %272 = vst [vmem:[#allocation2 + $0x8] sm:$0xff] 0.0
          %v273 = vlaneseq
          %vm274 = vcmp.ge.s32.totalorder %v273, 0
          %vm275 = vcmp.lt.s32.totalorder %v273, 256
          %vm276 = vmand %vm274, %vm275
          %277 = vst.msk [vmem:[#allocation3] sm:$0x3] %vm276, 0.0
        $region48: #{tpu_custom_call.1} parent=31 // pred_fallthru
          _
        %v278 = vld [vmem:[#allocation4] sm:$0xff]
        %v279 = vld [vmem:[#allocation4 + $0x8] sm:$0xff]
        %v280 = vld [vmem:[#allocation4 + $0x10] sm:$0xff]
        %v281 = vld [vmem:[#allocation4 + $0x18] sm:$0xff]
        %v282 = vld [vmem:[%s225] sm:$0xff]
        %v283 = vld [vmem:[%s225 + $0x8] sm:$0xff]
        %v284 = vld [vmem:[%s225 + $0x10] sm:$0xff]
        %v285 = vld [vmem:[%s225 + $0x18] sm:$0xff]
        %v286 = vld [vmem:[%s225 + $0x20] sm:$0xff]
        %v287 = vld [vmem:[%s225 + $0x28] sm:$0xff]
        %v288 = vld [vmem:[%s225 + $0x30] sm:$0xff]
        %v289 = vld [vmem:[%s225 + $0x38] sm:$0xff]
        %v290 = vld [vmem:[%s225 + $0x40] sm:$0xff]
        %v291 = vld [vmem:[%s225 + $0x48] sm:$0xff]
        %v292 = vld [vmem:[%s225 + $0x50] sm:$0xff]
        %v293 = vld [vmem:[%s225 + $0x58] sm:$0xff]
        %v294 = vld [vmem:[%s225 + $0x60] sm:$0xff]
        %v295 = vld [vmem:[%s225 + $0x68] sm:$0xff]
        %v296 = vld [vmem:[%s225 + $0x70] sm:$0xff]
        %v297 = vld [vmem:[%s225 + $0x78] sm:$0xff]
        %v298 = vld [vmem:[%s225 + $0x80] sm:$0xff]
        %v299 = vld [vmem:[%s225 + $0x88] sm:$0xff]
        %v300 = vld [vmem:[%s225 + $0x90] sm:$0xff]
        %v301 = vld [vmem:[%s225 + $0x98] sm:$0xff]
        %v302 = vld [vmem:[%s225 + $0xa0] sm:$0xff]
        %v303 = vld [vmem:[%s225 + $0xa8] sm:$0xff]
        %v304 = vld [vmem:[%s225 + $0xb0] sm:$0xff]
        %v305 = vld [vmem:[%s225 + $0xb8] sm:$0xff]
        %v306 = vld [vmem:[%s225 + $0xc0] sm:$0xff]
        %v307 = vld [vmem:[%s225 + $0xc8] sm:$0xff]
        %v308 = vld [vmem:[%s225 + $0xd0] sm:$0xff]
        %v309 = vld [vmem:[%s225 + $0xd8] sm:$0xff]
        %v310 = vld [vmem:[%s225 + $0xe0] sm:$0xff]
        %v311 = vld [vmem:[%s225 + $0xe8] sm:$0xff]
        %v312 = vld [vmem:[%s225 + $0xf0] sm:$0xff]
        %v313 = vld [vmem:[%s225 + $0xf8] sm:$0xff]
        %v314 = vld [vmem:[%s225 + $0x100] sm:$0xff]
        %v315 = vld [vmem:[%s225 + $0x108] sm:$0xff]
        %v316 = vld [vmem:[%s225 + $0x110] sm:$0xff]
        %v317 = vld [vmem:[%s225 + $0x118] sm:$0xff]
        %v318 = vld [vmem:[%s225 + $0x120] sm:$0xff]
        %v319 = vld [vmem:[%s225 + $0x128] sm:$0xff]
        %v320 = vld [vmem:[%s225 + $0x130] sm:$0xff]
        %v321 = vld [vmem:[%s225 + $0x138] sm:$0xff]
        %v322 = vld [vmem:[%s225 + $0x140] sm:$0xff]
        %v323 = vld [vmem:[%s225 + $0x148] sm:$0xff]
        %v324 = vld [vmem:[%s225 + $0x150] sm:$0xff]
        %v325 = vld [vmem:[%s225 + $0x158] sm:$0xff]
        %v326 = vld [vmem:[%s225 + $0x160] sm:$0xff]
        %v327 = vld [vmem:[%s225 + $0x168] sm:$0xff]
        %v328 = vld [vmem:[%s225 + $0x170] sm:$0xff]
        %v329 = vld [vmem:[%s225 + $0x178] sm:$0xff]
        %v330 = vld [vmem:[%s225 + $0x180] sm:$0xff]
        %v331 = vld [vmem:[%s225 + $0x188] sm:$0xff]
        %v332 = vld [vmem:[%s225 + $0x190] sm:$0xff]
        %v333 = vld [vmem:[%s225 + $0x198] sm:$0xff]
        %v334 = vld [vmem:[%s225 + $0x1a0] sm:$0xff]
        %v335 = vld [vmem:[%s225 + $0x1a8] sm:$0xff]
        %v336 = vld [vmem:[%s225 + $0x1b0] sm:$0xff]
        %v337 = vld [vmem:[%s225 + $0x1b8] sm:$0xff]
        %v338 = vld [vmem:[%s225 + $0x1c0] sm:$0xff]
        %v339 = vld [vmem:[%s225 + $0x1c8] sm:$0xff]
        %v340 = vld [vmem:[%s225 + $0x1d0] sm:$0xff]
        %v341 = vld [vmem:[%s225 + $0x1d8] sm:$0xff]
        %v342 = vld [vmem:[%s225 + $0x1e0] sm:$0xff]
        %v343 = vld [vmem:[%s225 + $0x1e8] sm:$0xff]
        %v344 = vld [vmem:[%s225 + $0x1f0] sm:$0xff]
        %v345 = vld [vmem:[%s225 + $0x1f8] sm:$0xff]
        %v346 = vld [vmem:[%s225 + $0x200] sm:$0xff]
        %v347 = vld [vmem:[%s225 + $0x208] sm:$0xff]
        %v348 = vld [vmem:[%s225 + $0x210] sm:$0xff]
        %v349 = vld [vmem:[%s225 + $0x218] sm:$0xff]
        %v350 = vld [vmem:[%s225 + $0x220] sm:$0xff]
        %v351 = vld [vmem:[%s225 + $0x228] sm:$0xff]
        %v352 = vld [vmem:[%s225 + $0x230] sm:$0xff]
        %v353 = vld [vmem:[%s225 + $0x238] sm:$0xff]
        %v354 = vld [vmem:[%s225 + $0x240] sm:$0xff]
        %v355 = vld [vmem:[%s225 + $0x248] sm:$0xff]
        %v356 = vld [vmem:[%s225 + $0x250] sm:$0xff]
        %v357 = vld [vmem:[%s225 + $0x258] sm:$0xff]
        %v358 = vld [vmem:[%s225 + $0x260] sm:$0xff]
        %v359 = vld [vmem:[%s225 + $0x268] sm:$0xff]
        %v360 = vld [vmem:[%s225 + $0x270] sm:$0xff]
        %v361 = vld [vmem:[%s225 + $0x278] sm:$0xff]
        %v362 = vld [vmem:[%s225 + $0x280] sm:$0xff]
        %v363 = vld [vmem:[%s225 + $0x288] sm:$0xff]
        %v364 = vld [vmem:[%s225 + $0x290] sm:$0xff]
        %v365 = vld [vmem:[%s225 + $0x298] sm:$0xff]
        %v366 = vld [vmem:[%s225 + $0x2a0] sm:$0xff]
        %v367 = vld [vmem:[%s225 + $0x2a8] sm:$0xff]
        %v368 = vld [vmem:[%s225 + $0x2b0] sm:$0xff]
        %v369 = vld [vmem:[%s225 + $0x2b8] sm:$0xff]
        %v370 = vld [vmem:[%s225 + $0x2c0] sm:$0xff]
        %v371 = vld [vmem:[%s225 + $0x2c8] sm:$0xff]
        %v372 = vld [vmem:[%s225 + $0x2d0] sm:$0xff]
        %v373 = vld [vmem:[%s225 + $0x2d8] sm:$0xff]
        %v374 = vld [vmem:[%s225 + $0x2e0] sm:$0xff]
        %v375 = vld [vmem:[%s225 + $0x2e8] sm:$0xff]
        %v376 = vld [vmem:[%s225 + $0x2f0] sm:$0xff]
        %v377 = vld [vmem:[%s225 + $0x2f8] sm:$0xff]
        %v378 = vld [vmem:[%s225 + $0x300] sm:$0xff]
        %v379 = vld [vmem:[%s225 + $0x308] sm:$0xff]
        %v380 = vld [vmem:[%s225 + $0x310] sm:$0xff]
        %v381 = vld [vmem:[%s225 + $0x318] sm:$0xff]
        %v382 = vld [vmem:[%s225 + $0x320] sm:$0xff]
        %v383 = vld [vmem:[%s225 + $0x328] sm:$0xff]
        %v384 = vld [vmem:[%s225 + $0x330] sm:$0xff]
        %v385 = vld [vmem:[%s225 + $0x338] sm:$0xff]
        %v386 = vld [vmem:[%s225 + $0x340] sm:$0xff]
        %v387 = vld [vmem:[%s225 + $0x348] sm:$0xff]
        %v388 = vld [vmem:[%s225 + $0x350] sm:$0xff]
        %v389 = vld [vmem:[%s225 + $0x358] sm:$0xff]
        %v390 = vld [vmem:[%s225 + $0x360] sm:$0xff]
        %v391 = vld [vmem:[%s225 + $0x368] sm:$0xff]
        %v392 = vld [vmem:[%s225 + $0x370] sm:$0xff]
        %v393 = vld [vmem:[%s225 + $0x378] sm:$0xff]
        %v394 = vld [vmem:[%s225 + $0x380] sm:$0xff]
        %v395 = vld [vmem:[%s225 + $0x388] sm:$0xff]
        %v396 = vld [vmem:[%s225 + $0x390] sm:$0xff]
        %v397 = vld [vmem:[%s225 + $0x398] sm:$0xff]
        %v398 = vld [vmem:[%s225 + $0x3a0] sm:$0xff]
        %v399 = vld [vmem:[%s225 + $0x3a8] sm:$0xff]
        %v400 = vld [vmem:[%s225 + $0x3b0] sm:$0xff]
        %v401 = vld [vmem:[%s225 + $0x3b8] sm:$0xff]
        %v402 = vld [vmem:[%s225 + $0x3c0] sm:$0xff]
        %v403 = vld [vmem:[%s225 + $0x3c8] sm:$0xff]
        %v404 = vld [vmem:[%s225 + $0x3d0] sm:$0xff]
        %v405 = vld [vmem:[%s225 + $0x3d8] sm:$0xff]
        %v406 = vld [vmem:[%s225 + $0x3e0] sm:$0xff]
        %v407 = vld [vmem:[%s225 + $0x3e8] sm:$0xff]
        %v408 = vld [vmem:[%s225 + $0x3f0] sm:$0xff]
        %v409 = vld [vmem:[%s225 + $0x3f8] sm:$0xff]
        %v410 = vld [vmem:[#allocation2] sm:$0xff]
        %v411 = vld [vmem:[#allocation2 + $0x8] sm:$0xff]
        %412 = vmatprep.subr.mxu0 %v343
        %413 = vmatpush1.xpose.msra.mxu0 %v342
        %414 = vmatprep.subr.mxu0 %v339
        %415 = vmatpush1.xpose.msra.mxu0 %v338
        %416 = vmatprep.subr.mxu0 %v335
        %417 = vmatpush1.xpose.msra.mxu0 %v334
        %418 = vmatprep.subr.mxu0 %v331
        %419 = vmatpush1.xpose.msra.mxu0 %v330
        %420 = vmatprep.subr.mxu0 %v327
        %421 = vmatpush1.xpose.msra.mxu0 %v326
        %422 = vmatprep.subr.mxu0 %v323
        %423 = vmatpush1.xpose.msra.mxu0 %v322
        %424 = vmatprep.subr.mxu0 %v319
        %425 = vmatpush1.xpose.msra.mxu0 %v318
        %426 = vmatprep.subr.mxu0 %v315
        %427 = vmatpush1.xpose.msra.mxu0 %v314
        %428 = vmatprep.subr.mxu0 %v311
        %429 = vmatpush1.xpose.msra.mxu0 %v310
        %430 = vmatprep.subr.mxu0 %v307
        %431 = vmatpush1.xpose.msra.mxu0 %v306
        %432 = vmatprep.subr.mxu0 %v303
        %433 = vmatpush1.xpose.msra.mxu0 %v302
        %434 = vmatprep.subr.mxu0 %v299
        %435 = vmatpush1.xpose.msra.mxu0 %v298
        %436 = vmatprep.subr.mxu0 %v295
        %437 = vmatpush1.xpose.msra.mxu0 %v294
        %438 = vmatprep.subr.mxu0 %v291
        %439 = vmatpush1.xpose.msra.mxu0 %v290
        %440 = vmatprep.subr.mxu0 %v287
        %441 = vmatpush1.xpose.msra.mxu0 %v286
        %442 = vmatprep.subr.mxu0 %v283
        %443 = vmatpush1.xpose.msra.mxu0 %v282
        %444 = vmatprep.subr.mxu0 %v407
        %445 = vmatpush2.xpose.msra.mxu0 %v406
        %446 = vmatprep.subr.mxu0 %v403
        %447 = vmatpush2.xpose.msra.mxu0 %v402
        %448 = vmatprep.subr.mxu0 %v399
        %449 = vmatpush2.xpose.msra.mxu0 %v398
        %450 = vmatprep.subr.mxu0 %v395
        %451 = vmatpush2.xpose.msra.mxu0 %v394
        %452 = vmatprep.subr.mxu0 %v391
        %453 = vmatpush2.xpose.msra.mxu0 %v390
        %454 = vmatprep.subr.mxu0 %v387
        %455 = vmatpush2.xpose.msra.mxu0 %v386
        %456 = vmatprep.subr.mxu0 %v383
        %457 = vmatpush2.xpose.msra.mxu0 %v382
        %458 = vmatprep.subr.mxu0 %v379
        %459 = vmatpush2.xpose.msra.mxu0 %v378
        %460 = vmatprep.subr.mxu0 %v375
        %461 = vmatpush2.xpose.msra.mxu0 %v374
        %462 = vmatprep.subr.mxu0 %v371
        %463 = vmatpush2.xpose.msra.mxu0 %v370
        %464 = vmatprep.subr.mxu0 %v367
        %465 = vmatpush2.xpose.msra.mxu0 %v366
        %466 = vmatprep.subr.mxu0 %v363
        %467 = vmatpush2.xpose.msra.mxu0 %v362
        %468 = vmatprep.subr.mxu0 %v359
        %469 = vmatpush2.xpose.msra.mxu0 %v358
        %470 = vmatprep.subr.mxu0 %v355
        %471 = vmatpush2.xpose.msra.mxu0 %v354
        %472 = vmatprep.subr.mxu0 %v351
        %473 = vmatpush2.xpose.msra.mxu0 %v350
        %474 = vmatprep.subr.mxu0 %v347
        %475 = vmatpush2.xpose.msra.mxu0 %v346
        %476 = vmatprep.mubr.f32.mxu0 %v279
        %477 = vmatmul.mubr.f32.gmra.mxu0 %v278
        %v478 = vpop.f32.mrf.mxu0
        %v479 = vadd.f32 0.0, %v478
        %v480 = vpop.f32.mrf.mxu0
        %v481 = vadd.f32 0.0, %v480
        %482 = vdwg.mxu0
        %483 = vmatprep.subr.mxu0 %v345
        %484 = vmatpush1.xpose.msra.mxu0 %v344
        %485 = vmatprep.subr.mxu0 %v341
        %486 = vmatpush1.xpose.msra.mxu0 %v340
        %487 = vmatprep.subr.mxu0 %v337
        %488 = vmatpush1.xpose.msra.mxu0 %v336
        %489 = vmatprep.subr.mxu0 %v333
        %490 = vmatpush1.xpose.msra.mxu0 %v332
        %491 = vmatprep.subr.mxu0 %v329
        %492 = vmatpush1.xpose.msra.mxu0 %v328
        %493 = vmatprep.subr.mxu0 %v325
        %494 = vmatpush1.xpose.msra.mxu0 %v324
        %495 = vmatprep.subr.mxu0 %v321
        %496 = vmatpush1.xpose.msra.mxu0 %v320
        %497 = vmatprep.subr.mxu0 %v317
        %498 = vmatpush1.xpose.msra.mxu0 %v316
        %499 = vmatprep.subr.mxu0 %v313
        %500 = vmatpush1.xpose.msra.mxu0 %v312
        %501 = vmatprep.subr.mxu0 %v309
        %502 = vmatpush1.xpose.msra.mxu0 %v308
        %503 = vmatprep.subr.mxu0 %v305
        %504 = vmatpush1.xpose.msra.mxu0 %v304
        %505 = vmatprep.subr.mxu0 %v301
        %506 = vmatpush1.xpose.msra.mxu0 %v300
        %507 = vmatprep.subr.mxu0 %v297
        %508 = vmatpush1.xpose.msra.mxu0 %v296
        %509 = vmatprep.subr.mxu0 %v293
        %510 = vmatpush1.xpose.msra.mxu0 %v292
        %511 = vmatprep.subr.mxu0 %v289
        %512 = vmatpush1.xpose.msra.mxu0 %v288
        %513 = vmatprep.subr.mxu0 %v285
        %514 = vmatpush1.xpose.msra.mxu0 %v284
        %515 = vmatprep.subr.mxu0 %v409
        %516 = vmatpush2.xpose.msra.mxu0 %v408
        %517 = vmatprep.subr.mxu0 %v405
        %518 = vmatpush2.xpose.msra.mxu0 %v404
        %519 = vmatprep.subr.mxu0 %v401
        %520 = vmatpush2.xpose.msra.mxu0 %v400
        %521 = vmatprep.subr.mxu0 %v397
        %522 = vmatpush2.xpose.msra.mxu0 %v396
        %523 = vmatprep.subr.mxu0 %v393
        %524 = vmatpush2.xpose.msra.mxu0 %v392
        %525 = vmatprep.subr.mxu0 %v389
        %526 = vmatpush2.xpose.msra.mxu0 %v388
        %527 = vmatprep.subr.mxu0 %v385
        %528 = vmatpush2.xpose.msra.mxu0 %v384
        %529 = vmatprep.subr.mxu0 %v381
        %530 = vmatpush2.xpose.msra.mxu0 %v380
        %531 = vmatprep.subr.mxu0 %v377
        %532 = vmatpush2.xpose.msra.mxu0 %v376
        %533 = vmatprep.subr.mxu0 %v373
        %534 = vmatpush2.xpose.msra.mxu0 %v372
        %535 = vmatprep.subr.mxu0 %v369
        %536 = vmatpush2.xpose.msra.mxu0 %v368
        %537 = vmatprep.subr.mxu0 %v365
        %538 = vmatpush2.xpose.msra.mxu0 %v364
        %539 = vmatprep.subr.mxu0 %v361
        %540 = vmatpush2.xpose.msra.mxu0 %v360
        %541 = vmatprep.subr.mxu0 %v357
        %542 = vmatpush2.xpose.msra.mxu0 %v356
        %543 = vmatprep.subr.mxu0 %v353
        %544 = vmatpush2.xpose.msra.mxu0 %v352
        %545 = vmatprep.subr.mxu0 %v349
        %546 = vmatpush2.xpose.msra.mxu0 %v348
        %547 = vmatprep.mubr.f32.mxu0 %v281
        %548 = vmatmul.mubr.f32.gmra.mxu0 %v280
        %v549 = vpop.f32.mrf.mxu0
        %v550 = vadd.f32 %v479, %v549
        %v551 = vpop.f32.mrf.mxu0
        %v552 = vadd.f32 %v481, %v551
        %553 = vdwg.mxu0
        %v554 = vadd.f32 %v410, %v550
        %v555 = vadd.f32 %v411, %v552
        %556 = vst [vmem:[#allocation2] sm:$0xff] %v554
        %557 = vst [vmem:[#allocation2 + $0x8] sm:$0xff] %v555
        %v558 = vld [vmem:[#allocation3] sm:$0x3]
        %v559 = vmul.f32 %v282, %v282
        %v560 = vmul.f32 %v283, %v283
        %v561 = vmul.f32 %v284, %v284
        %v562 = vmul.f32 %v285, %v285
        %v563 = vmul.f32 %v286, %v286
        %v564 = vmul.f32 %v287, %v287
        %v565 = vmul.f32 %v288, %v288
        %v566 = vmul.f32 %v289, %v289
        %v567 = vmul.f32 %v290, %v290
        %v568 = vmul.f32 %v291, %v291
        %v569 = vmul.f32 %v292, %v292
        %v570 = vmul.f32 %v293, %v293
        %v571 = vmul.f32 %v294, %v294
        %v572 = vmul.f32 %v295, %v295
        %v573 = vmul.f32 %v296, %v296
        %v574 = vmul.f32 %v297, %v297
        %v575 = vmul.f32 %v298, %v298
        %v576 = vmul.f32 %v299, %v299
        %v577 = vmul.f32 %v300, %v300
        %v578 = vmul.f32 %v301, %v301
        %v579 = vmul.f32 %v302, %v302
        %v580 = vmul.f32 %v303, %v303
        %v581 = vmul.f32 %v304, %v304
        %v582 = vmul.f32 %v305, %v305
        %v583 = vmul.f32 %v306, %v306
        %v584 = vmul.f32 %v307, %v307
        %v585 = vmul.f32 %v308, %v308
        %v586 = vmul.f32 %v309, %v309
        %v587 = vmul.f32 %v310, %v310
        %v588 = vmul.f32 %v311, %v311
        %v589 = vmul.f32 %v312, %v312
        %v590 = vmul.f32 %v313, %v313
        %v591 = vmul.f32 %v314, %v314
        %v592 = vmul.f32 %v315, %v315
        %v593 = vmul.f32 %v316, %v316
        %v594 = vmul.f32 %v317, %v317
        %v595 = vmul.f32 %v318, %v318
        %v596 = vmul.f32 %v319, %v319
        %v597 = vmul.f32 %v320, %v320
        %v598 = vmul.f32 %v321, %v321
        %v599 = vmul.f32 %v322, %v322
        %v600 = vmul.f32 %v323, %v323
        %v601 = vmul.f32 %v324, %v324
        %v602 = vmul.f32 %v325, %v325
        %v603 = vmul.f32 %v326, %v326
        %v604 = vmul.f32 %v327, %v327
        %v605 = vmul.f32 %v328, %v328
        %v606 = vmul.f32 %v329, %v329
        %v607 = vmul.f32 %v330, %v330
        %v608 = vmul.f32 %v331, %v331
        %v609 = vmul.f32 %v332, %v332
        %v610 = vmul.f32 %v333, %v333
        %v611 = vmul.f32 %v334, %v334
        %v612 = vmul.f32 %v335, %v335
        %v613 = vmul.f32 %v336, %v336
        %v614 = vmul.f32 %v337, %v337
        %v615 = vmul.f32 %v338, %v338
        %v616 = vmul.f32 %v339, %v339
        %v617 = vmul.f32 %v340, %v340
        %v618 = vmul.f32 %v341, %v341
        %v619 = vmul.f32 %v342, %v342
        %v620 = vmul.f32 %v343, %v343
        %v621 = vmul.f32 %v344, %v344
        %v622 = vmul.f32 %v345, %v345
        %v623 = vmul.f32 %v346, %v346
        %v624 = vmul.f32 %v347, %v347
        %v625 = vmul.f32 %v348, %v348
        %v626 = vmul.f32 %v349, %v349
        %v627 = vmul.f32 %v350, %v350
        %v628 = vmul.f32 %v351, %v351
        %v629 = vmul.f32 %v352, %v352
        %v630 = vmul.f32 %v353, %v353
        %v631 = vmul.f32 %v354, %v354
        %v632 = vmul.f32 %v355, %v355
        %v633 = vmul.f32 %v356, %v356
        %v634 = vmul.f32 %v357, %v357
        %v635 = vmul.f32 %v358, %v358
        %v636 = vmul.f32 %v359, %v359
        %v637 = vmul.f32 %v360, %v360
        %v638 = vmul.f32 %v361, %v361
        %v639 = vmul.f32 %v362, %v362
        %v640 = vmul.f32 %v363, %v363
        %v641 = vmul.f32 %v364, %v364
        %v642 = vmul.f32 %v365, %v365
        %v643 = vmul.f32 %v366, %v366
        %v644 = vmul.f32 %v367, %v367
        %v645 = vmul.f32 %v368, %v368
        %v646 = vmul.f32 %v369, %v369
        %v647 = vmul.f32 %v370, %v370
        %v648 = vmul.f32 %v371, %v371
        %v649 = vmul.f32 %v372, %v372
        %v650 = vmul.f32 %v373, %v373
        %v651 = vmul.f32 %v374, %v374
        %v652 = vmul.f32 %v375, %v375
        %v653 = vmul.f32 %v376, %v376
        %v654 = vmul.f32 %v377, %v377
        %v655 = vmul.f32 %v378, %v378
        %v656 = vmul.f32 %v379, %v379
        %v657 = vmul.f32 %v380, %v380
        %v658 = vmul.f32 %v381, %v381
        %v659 = vmul.f32 %v382, %v382
        %v660 = vmul.f32 %v383, %v383
        %v661 = vmul.f32 %v384, %v384
        %v662 = vmul.f32 %v385, %v385
        %v663 = vmul.f32 %v386, %v386
        %v664 = vmul.f32 %v387, %v387
        %v665 = vmul.f32 %v388, %v388
        %v666 = vmul.f32 %v389, %v389
        %v667 = vmul.f32 %v390, %v390
        %v668 = vmul.f32 %v391, %v391
        %v669 = vmul.f32 %v392, %v392
        %v670 = vmul.f32 %v393, %v393
        %v671 = vmul.f32 %v394, %v394
        %v672 = vmul.f32 %v395, %v395
        %v673 = vmul.f32 %v396, %v396
        %v674 = vmul.f32 %v397, %v397
        %v675 = vmul.f32 %v398, %v398
        %v676 = vmul.f32 %v399, %v399
        %v677 = vmul.f32 %v400, %v400
        %v678 = vmul.f32 %v401, %v401
        %v679 = vmul.f32 %v402, %v402
        %v680 = vmul.f32 %v403, %v403
        %v681 = vmul.f32 %v404, %v404
        %v682 = vmul.f32 %v405, %v405
        %v683 = vmul.f32 %v406, %v406
        %v684 = vmul.f32 %v407, %v407
        %v685 = vmul.f32 %v408, %v408
        %v686 = vmul.f32 %v409, %v409
        %687 = vmatprep.subr.mxu0 %v620
        %688 = vmatpush1.xpose.msra.mxu0 %v619
        %689 = vmatprep.subr.mxu0 %v616
        %690 = vmatpush1.xpose.msra.mxu0 %v615
        %691 = vmatprep.subr.mxu0 %v612
        %692 = vmatpush1.xpose.msra.mxu0 %v611
        %693 = vmatprep.subr.mxu0 %v608
        %694 = vmatpush1.xpose.msra.mxu0 %v607
        %695 = vmatprep.subr.mxu0 %v604
        %696 = vmatpush1.xpose.msra.mxu0 %v603
        %697 = vmatprep.subr.mxu0 %v600
        %698 = vmatpush1.xpose.msra.mxu0 %v599
        %699 = vmatprep.subr.mxu0 %v596
        %700 = vmatpush1.xpose.msra.mxu0 %v595
        %701 = vmatprep.subr.mxu0 %v592
        %702 = vmatpush1.xpose.msra.mxu0 %v591
        %703 = vmatprep.subr.mxu0 %v588
        %704 = vmatpush1.xpose.msra.mxu0 %v587
        %705 = vmatprep.subr.mxu0 %v584
        %706 = vmatpush1.xpose.msra.mxu0 %v583
        %707 = vmatprep.subr.mxu0 %v580
        %708 = vmatpush1.xpose.msra.mxu0 %v579
        %709 = vmatprep.subr.mxu0 %v576
        %710 = vmatpush1.xpose.msra.mxu0 %v575
        %711 = vmatprep.subr.mxu0 %v572
        %712 = vmatpush1.xpose.msra.mxu0 %v571
        %713 = vmatprep.subr.mxu0 %v568
        %714 = vmatpush1.xpose.msra.mxu0 %v567
        %715 = vmatprep.subr.mxu0 %v564
        %716 = vmatpush1.xpose.msra.mxu0 %v563
        %717 = vmatprep.subr.mxu0 %v560
        %718 = vmatpush1.xpose.msra.mxu0 %v559
        %719 = vmatprep.subr.mxu0 %v684
        %720 = vmatpush2.xpose.msra.mxu0 %v683
        %721 = vmatprep.subr.mxu0 %v680
        %722 = vmatpush2.xpose.msra.mxu0 %v679
        %723 = vmatprep.subr.mxu0 %v676
        %724 = vmatpush2.xpose.msra.mxu0 %v675
        %725 = vmatprep.subr.mxu0 %v672
        %726 = vmatpush2.xpose.msra.mxu0 %v671
        %727 = vmatprep.subr.mxu0 %v668
        %728 = vmatpush2.xpose.msra.mxu0 %v667
        %729 = vmatprep.subr.mxu0 %v664
        %730 = vmatpush2.xpose.msra.mxu0 %v663
        %731 = vmatprep.subr.mxu0 %v660
        %732 = vmatpush2.xpose.msra.mxu0 %v659
        %733 = vmatprep.subr.mxu0 %v656
        %734 = vmatpush2.xpose.msra.mxu0 %v655
        %735 = vmatprep.subr.mxu0 %v652
        %736 = vmatpush2.xpose.msra.mxu0 %v651
        %737 = vmatprep.subr.mxu0 %v648
        %738 = vmatpush2.xpose.msra.mxu0 %v647
        %739 = vmatprep.subr.mxu0 %v644
        %740 = vmatpush2.xpose.msra.mxu0 %v643
        %741 = vmatprep.subr.mxu0 %v640
        %742 = vmatpush2.xpose.msra.mxu0 %v639
        %743 = vmatprep.subr.mxu0 %v636
        %744 = vmatpush2.xpose.msra.mxu0 %v635
        %745 = vmatprep.subr.mxu0 %v632
        %746 = vmatpush2.xpose.msra.mxu0 %v631
        %747 = vmatprep.subr.mxu0 %v628
        %748 = vmatpush2.xpose.msra.mxu0 %v627
        %749 = vmatprep.subr.mxu0 %v624
        %750 = vmatpush2.xpose.msra.mxu0 %v623
        %751 = vmatprep.mubr.f32.mxu0 1.0
        %752 = vmatmul.mubr.f32.gmra.mxu0 1.0
        %v753 = vpop.f32.mrf.mxu0
        %v754 = vadd.f32 0.0, %v753
        %v755 = vpop.f32.mrf.mxu0
        %v756 = vadd.f32 0.0, %v755
        %757 = vdwg.mxu0
        %758 = vmatprep.subr.mxu0 %v622
        %759 = vmatpush1.xpose.msra.mxu0 %v621
        %760 = vmatprep.subr.mxu0 %v618
        %761 = vmatpush1.xpose.msra.mxu0 %v617
        %762 = vmatprep.subr.mxu0 %v614
        %763 = vmatpush1.xpose.msra.mxu0 %v613
        %764 = vmatprep.subr.mxu0 %v610
        %765 = vmatpush1.xpose.msra.mxu0 %v609
        %766 = vmatprep.subr.mxu0 %v606
        %767 = vmatpush1.xpose.msra.mxu0 %v605
        %768 = vmatprep.subr.mxu0 %v602
        %769 = vmatpush1.xpose.msra.mxu0 %v601
        %770 = vmatprep.subr.mxu0 %v598
        %771 = vmatpush1.xpose.msra.mxu0 %v597
        %772 = vmatprep.subr.mxu0 %v594
        %773 = vmatpush1.xpose.msra.mxu0 %v593
        %774 = vmatprep.subr.mxu0 %v590
        %775 = vmatpush1.xpose.msra.mxu0 %v589
        %776 = vmatprep.subr.mxu0 %v586
        %777 = vmatpush1.xpose.msra.mxu0 %v585
        %778 = vmatprep.subr.mxu0 %v582
        %779 = vmatpush1.xpose.msra.mxu0 %v581
        %780 = vmatprep.subr.mxu0 %v578
        %781 = vmatpush1.xpose.msra.mxu0 %v577
        %782 = vmatprep.subr.mxu0 %v574
        %783 = vmatpush1.xpose.msra.mxu0 %v573
        %784 = vmatprep.subr.mxu0 %v570
        %785 = vmatpush1.xpose.msra.mxu0 %v569
        %786 = vmatprep.subr.mxu0 %v566
        %787 = vmatpush1.xpose.msra.mxu0 %v565
        %788 = vmatprep.subr.mxu0 %v562
        %789 = vmatpush1.xpose.msra.mxu0 %v561
        %790 = vmatprep.subr.mxu0 %v686
        %791 = vmatpush2.xpose.msra.mxu0 %v685
        %792 = vmatprep.subr.mxu0 %v682
        %793 = vmatpush2.xpose.msra.mxu0 %v681
        %794 = vmatprep.subr.mxu0 %v678
        %795 = vmatpush2.xpose.msra.mxu0 %v677
        %796 = vmatprep.subr.mxu0 %v674
        %797 = vmatpush2.xpose.msra.mxu0 %v673
        %798 = vmatprep.subr.mxu0 %v670
        %799 = vmatpush2.xpose.msra.mxu0 %v669
        %800 = vmatprep.subr.mxu0 %v666
        %801 = vmatpush2.xpose.msra.mxu0 %v665
        %802 = vmatprep.subr.mxu0 %v662
        %803 = vmatpush2.xpose.msra.mxu0 %v661
        %804 = vmatprep.subr.mxu0 %v658
        %805 = vmatpush2.xpose.msra.mxu0 %v657
        %806 = vmatprep.subr.mxu0 %v654
        %807 = vmatpush2.xpose.msra.mxu0 %v653
        %808 = vmatprep.subr.mxu0 %v650
        %809 = vmatpush2.xpose.msra.mxu0 %v649
        %810 = vmatprep.subr.mxu0 %v646
        %811 = vmatpush2.xpose.msra.mxu0 %v645
        %812 = vmatprep.subr.mxu0 %v642
        %813 = vmatpush2.xpose.msra.mxu0 %v641
        %814 = vmatprep.subr.mxu0 %v638
        %815 = vmatpush2.xpose.msra.mxu0 %v637
        %816 = vmatprep.subr.mxu0 %v634
        %817 = vmatpush2.xpose.msra.mxu0 %v633
        %818 = vmatprep.subr.mxu0 %v630
        %819 = vmatpush2.xpose.msra.mxu0 %v629
        %820 = vmatprep.subr.mxu0 %v626
        %821 = vmatpush2.xpose.msra.mxu0 %v625
        %822 = vmatprep.mubr.f32.mxu0 1.0
        %823 = vmatmul.mubr.f32.gmra.mxu0 1.0
        %v824 = vpop.f32.mrf.mxu0
        %v825 = vadd.f32 %v754, %v824
        %v826 = vpop.f32.mrf.mxu0
        %v827 = vadd.f32 %v756, %v826
        %828 = vdwg.mxu0
        %v831 = vcombine.low %v825, %v827
        %v833 = vunpack.c.l.s4 1966171168
        %v834 = vunpack.c.0.s8 %v833
        %v835 = vlaneseq
        %v836 = vshrl.u32 %v835, 7
        %v837 = vsub.s32 %v834, %v836
        %v838 = vrot.slane %v831, %v837
        %v840 = vunpack.c.l.s4 1966171168
        %v841 = vunpack.c.0.s8 %v840
        %v842 = vlaneseq
        %v843 = vshrl.u32 %v842, 7
        %v844 = vsub.s32 %v841, %v843
        %v845 = vrot.slane %v838, %v844
        %v847 = vadd.f32 %v558, %v845
        %v848 = vlaneseq
        %vm849 = vcmp.ge.s32.totalorder %v848, 0
        %vm850 = vcmp.lt.s32.totalorder %v848, 256
        %vm851 = vmand %vm849, %vm850
        %852 = vst.msk [vmem:[#allocation3] sm:$0x3] %vm851, %v847
        // Predicated region
        $region49: #{tpu_custom_call.1} parent=31 // pred_check
          %p853 = pneg %p267
        $region50: #{tpu_custom_call.1} parent=31 // pred_check_branch
          %855 = sbr.rel (%p853) target = $region52
        $region51: #{tpu_custom_call.1} parent=31 // pred_region
          %v856 = vld [vmem:[#allocation2] sm:$0xff]
          %v857 = vld [vmem:[#allocation2 + $0x8] sm:$0xff]
          %v858 = vld [vmem:[%s234] ss:$4 sm:$0x3]
          %s859 = scalar_lea.vmem %s234, 1 [#allocation9]
          %v860 = vld [vmem:[%s859] ss:$4 sm:$0x3]
          %s861 = scalar_lea.vmem %s234, 2 [#allocation9]
          %v862 = vld [vmem:[%s861] ss:$4 sm:$0x3]
          %v863 = vld [vmem:[#allocation3] sm:$0x3]
          %v864 = vrsqrt.pop %v863
          %v865 = vmul.f32 %v858, %v864
          %v866 = vrot.slane %v856, 4
          %v867 = vadd.f32 %v856, %v866
          %v868 = vrot.slane %v867, 2
          %v869 = vadd.f32 %v867, %v868
          %v870 = vrot.slane %v869, 1
          %v871 = vadd.f32 %v869, %v870
          %v872 = vrot.slane %v857, 4
          %v873 = vadd.f32 %v857, %v872
          %v874 = vrot.slane %v873, 2
          %v875 = vadd.f32 %v873, %v874
          %v876 = vrot.slane %v875, 1
          %v877 = vadd.f32 %v875, %v876
          %v878 = vmul.f32 %v871, 0.125
          %v879 = vmul.f32 %v877, 0.125
          %v880 = vsub.f32 %v856, %v878
          %v881 = vsub.f32 %v857, %v879
          %v882 = vmul.f32 %v880, %v880
          %v883 = vmul.f32 %v881, %v881
          %v884 = vrot.slane %v882, 4
          %v885 = vadd.f32 %v882, %v884
          %v886 = vrot.slane %v885, 2
          %v887 = vadd.f32 %v885, %v886
          %v888 = vrot.slane %v887, 1
          %v889 = vadd.f32 %v887, %v888
          %v890 = vrot.slane %v883, 4
          %v891 = vadd.f32 %v883, %v890
          %v892 = vrot.slane %v891, 2
          %v893 = vadd.f32 %v891, %v892
          %v894 = vrot.slane %v893, 1
          %v895 = vadd.f32 %v893, %v894
          %v896 = vmul.f32 %v889, 0.125
          %v897 = vmul.f32 %v895, 0.125
          %v898 = vmul.f32 %v860, %v865
          %v899 = vmul.f32 %v865, %v865
          %v902 = vcombine.low %v896, %v897
          %v904 = vunpack.c.l.s4 1966171168
          %v905 = vunpack.c.0.s8 %v904
          %v906 = vlaneseq
          %v907 = vshrl.u32 %v906, 7
          %v908 = vsub.s32 %v905, %v907
          %v909 = vrot.slane %v902, %v908
          %v911 = vunpack.c.l.s4 1966171168
          %v912 = vunpack.c.0.s8 %v911
          %v913 = vlaneseq
          %v914 = vshrl.u32 %v913, 7
          %v915 = vsub.s32 %v912, %v914
          %v916 = vrot.slane %v909, %v915
          %v918 = vmul.f32 %v899, %v916
          %v919 = vadd.f32 %v918, 1e-05
          %v920 = vrsqrt.pop %v919
          %v921 = vmul.f32 %v898, %v920
          %v923 = vlaneseq
          %v924 = vshrl.u32 %v923, 7
          %v925 = vsub.s32 0, %v924
          %v926 = vrot.slane %v921, %v925
          %v927 = vlaneseq
          %v928 = vshrl.u32 %v927, 7
          %v929 = vsub.s32 1, %v928
          %v930 = vrot.slane %v921, %v929
          %v933 = vmul.f32 %v878, %v926
          %v934 = vmul.f32 %v879, %v930
          %v937 = vcombine.low %v933, %v934
          %v939 = vunpack.c.l.s4 1966171168
          %v940 = vunpack.c.0.s8 %v939
          %v941 = vlaneseq
          %v942 = vshrl.u32 %v941, 7
          %v943 = vsub.s32 %v940, %v942
          %v944 = vrot.slane %v937, %v943
          %v946 = vunpack.c.l.s4 1966171168
          %v947 = vunpack.c.0.s8 %v946
          %v948 = vlaneseq
          %v949 = vshrl.u32 %v948, 7
          %v950 = vsub.s32 %v947, %v949
          %v951 = vrot.slane %v944, %v950
          %v953 = vsub.f32 %v862, %v951
          %v954 = vmul.f32 %v856, %v926
          %v955 = vmul.f32 %v857, %v930
          %v957 = vlaneseq
          %v958 = vshrl.u32 %v957, 7
          %v959 = vsub.s32 0, %v958
          %v960 = vrot.slane %v953, %v959
          %v961 = vlaneseq
          %v962 = vshrl.u32 %v961, 7
          %v963 = vsub.s32 1, %v962
          %v964 = vrot.slane %v953, %v963
          %v967 = vadd.f32 %v954, %v960
          %v968 = vadd.f32 %v955, %v964
          %969 = vst [vmem:[%s261] sm:$0xff] %v967
          %970 = vst [vmem:[%s261 + $0x8] sm:$0xff] %v968
        $region52: #{tpu_custom_call.1} parent=31 // pred_fallthru
          _
        %s971 = sand.u32 %s121, 1
        %s972 = scalar_lea.sflag [#allocation6], %s971
        %s973 = sand.u32 %s121, 1
        %s974 = smul.addr %s973, 16
        %s975 = scalar_lea.vmem [#allocation10], %s974
        // Predicated region
        $region53: #{tpu_custom_call.1} parent=31 // pred_check
          %p976 = pneg %p131
        $region54: #{tpu_custom_call.1} parent=31 // pred_check_branch
          %978 = sbr.rel (%p976) target = $region56
        $region55: #{tpu_custom_call.1} parent=31 // pred_region
          %s979 = smul.u32 2, %s25
          %s981 = ssub.s32 256, 256
          %982 = vsyncadd %s972, %s981
          %s983 = smul.addr %s979, 128
          %s984 = scalar_lea.hbm %s3, %s983
          %s986 = sshll.u32 %s975, 4
          %s987 = int_to_ptr.vmem [resolvable:$true] %s986
          %989 = dma.vmem_to_hbm [thread:$0]  %s987, 256, %s984, %s972
        $region56: #{tpu_custom_call.1} parent=31 // pred_fallthru
          _
      $region32: #{tpu_custom_call.1} parent=5 // pred_fallthru
        _
      %p990 = scmp.le.s32.totalorder 2, %s16
      // Predicated region
      $region57: #{tpu_custom_call.1} parent=5 // pred_check
        %p991 = pneg %p990
      $region58: #{tpu_custom_call.1} parent=5 // pred_check_branch
        %993 = sbr.rel (%p991) target = $region60
      $region59: #{tpu_custom_call.1} parent=5 // pred_region
        %s994 = ssub.s32 %s16, 2
        // Predicated region
        $region61: #{tpu_custom_call.1} parent=59 // pred_check
          %p995 = pneg %p137
        $region62: #{tpu_custom_call.1} parent=59 // pred_check_branch
          %997 = sbr.rel (%p995) target = $region64
        $region63: #{tpu_custom_call.1} parent=59 // pred_region
          %s998 = sand.u32 %s122, 1
          %s999 = scalar_lea.sflag [#allocation6], %s998
          %s1000 = sand.u32 %s122, 1
          %s1001 = smul.addr %s1000, 16
          %s1002 = scalar_lea.vmem [#allocation10], %s1001
          %1003 = dma.done %s999, 256
        $region64: #{tpu_custom_call.1} parent=59 // pred_fallthru
          _
      $region60: #{tpu_custom_call.1} parent=5 // pred_fallthru
        _
    $region6: #{tpu_custom_call.1} parent=1 // loop_footer
      %s20 = sadd.s32 1, %s16
    $region7: #{tpu_custom_call.1} parent=1 // loop_footer_branch
      %15 = sbr.rel target = $region3
    $region8: #{tpu_custom_call.1} parent=1 // loop_exit
      _
    %1004 = vsyncpa [#allocation5], 1
    %s1005 = scalar_lea.sflag [#allocation5], 1
    %1006 = vsyncpa %s1005, 1
    %1007 = vsyncpa [#allocation8], 1
    %s1008 = scalar_lea.sflag [#allocation8], 1
    %1009 = vsyncpa %s1008, 1
    %1010 = vsyncpa [#allocation6], 1
    %s1011 = scalar_lea.sflag [#allocation6], 1
    %1012 = vsyncpa %s1011, 1

</llo_original>
